<compile_context>
chip_gen: v7x
topology: tpu7x:2x2x1
jax: 0.10.0
libtpu: 0.0.40
codegen_flags: <defaults>
</compile_context>

<pallas_src>
import functools

import jax
import jax.numpy as jnp
from jax import lax
from jax.experimental import pallas as pl
from jax.experimental.pallas import tpu as pltpu

_LANES = 128
_VMEM_LIMIT = 32 * 1024 * 1024
_BN_EPS = 1e-5


# ------------------------------ small helpers ------------------------------ #

def _round_up(x, m):
    return (x + m - 1) // m * m


def _largest_divisor_leq(n, cap):
    for t in range(min(n, cap), 0, -1):
        if n % t == 0:
            return t
    return 1


def _pick_m_tile(m, cap=512):
    # second-to-last block dim must be a multiple of 8 or the full extent
    for t in range(min(m, cap), 0, -1):
        if m % t == 0 and (t % 8 == 0 or t == m):
            return t
    return m


def _pad_last(x, c):
    pad = c - x.shape[-1]
    if pad == 0:
        return x
    cfg = [(0, 0)] * (x.ndim - 1) + [(0, pad)]
    return jnp.pad(x, cfg)


# ------------------------------ Pallas kernels ------------------------------ #

def _mm_bias_kernel(x_ref, w_ref, b_ref, o_ref):
    # (tm, K) @ (K, N) + (1, N)   (bf16 x bf16 -> f32 accumulation)
    o_ref[...] = jnp.dot(x_ref[...], w_ref[...],
                         preferred_element_type=jnp.float32) + b_ref[...]


def _conv3x3_stats_kernel(xw_ref, w_ref, b_ref, y_ref, stats_ref):
    # xw_ref   : (1, th+2, W+2, Cinp)  bf16  zero-padded input row-window
    # w_ref    : (9, Cinp, Coutp)      bf16  taps ordered (dy, dx)
    # b_ref    : (1, Coutp)            f32   conv bias
    # y_ref    : (1, th, W, Coutp)     f32   pre-BN conv output tile
    # stats_ref: (2, Coutp)            f32   [sum, sum-of-squares] accumulator
    _, th, wo, coutp = y_ref.shape
    cinp = xw_ref.shape[-1]
    x = xw_ref[...][0]                       # (th+2, W+2, Cinp)

    acc = jnp.zeros((th * wo, coutp), jnp.float32)
    for dy in range(3):
        for dx in range(3):
            patch = x[dy:dy + th, dx:dx + wo, :].reshape(th * wo, cinp)
            acc = acc + jnp.dot(patch, w_ref[dy * 3 + dx],
                                preferred_element_type=jnp.float32)
    acc = acc + b_ref[...]
    y_ref[...] = acc.reshape(1, th, wo, coutp)

    # accumulate BN batch statistics across the whole (arbitrary) grid
    @pl.when((pl.program_id(0) == 0) & (pl.program_id(1) == 0))
    def _():
        stats_ref[...] = jnp.zeros_like(stats_ref)

    s = jnp.concatenate(
        [jnp.sum(acc, axis=0, keepdims=True),
         jnp.sum(acc * acc, axis=0, keepdims=True)], axis=0)   # (2, Coutp)
    stats_ref[...] += s


def _bn_relu_kernel(y_ref, stats_ref, gb_ref, o_ref, *, inv_count, eps):
    # y_ref: (1, th, W, Cp) f32 ; stats_ref: (2, Cp) f32 ; gb_ref: (2, Cp) f32
    s = stats_ref[...]
    mean = s[0:1, :] * inv_count
    var = jnp.maximum(s[1:2, :] * inv_count - mean * mean, 0.0)
    scale = gb_ref[0:1, :] * lax.rsqrt(var + eps)
    shift = gb_ref[1:2, :] - mean * scale
    y = y_ref[...]
    o_ref[...] = jnp.maximum(y * scale + shift, 0.0).astype(o_ref.dtype)


# ------------------------------ Pallas wrappers ----------------------------- #

def _pallas_matmul_bias(x2d, w2d, b2d):
    m, k = x2d.shape
    n = w2d.shape[1]
    tm = _pick_m_tile(m)
    return pl.pallas_call(
        _mm_bias_kernel,
        out_shape=jax.ShapeDtypeStruct((m, n), jnp.float32),
        grid=(m // tm,),
        in_specs=[pl.BlockSpec((tm, k), lambda i: (i, 0)),
                  pl.BlockSpec((k, n), lambda i: (0, 0)),
                  pl.BlockSpec((1, n), lambda i: (0, 0))],
        out_specs=pl.BlockSpec((tm, n), lambda i: (i, 0)),
        compiler_params=pltpu.CompilerParams(
            dimension_semantics=("parallel",),
            vmem_limit_bytes=_VMEM_LIMIT),
    )(x2d, w2d, b2d)


def _pallas_conv3x3_bn_relu(x_nhwc, w_oihw, bias, gamma, beta,
                            out_dtype=jnp.float32, row_tile_cap=32):
    """Conv2d(3x3, pad=1) + BatchNorm2d(train stats) + ReLU, fully padded to
    128-lane channels.  The input may already carry zero-padded extra channels
    (>= w_oihw.shape[1]); the output carries round_up(cout, 128) channels where
    channels >= cout are exact zeros (so convs can be chained)."""
    n, h, w, cdata = x_nhwc.shape
    cout, cin_logical = w_oihw.shape[0], w_oihw.shape[1]
    cinp = _round_up(max(cdata, cin_logical), _LANES)
    coutp = _round_up(cout, _LANES)
    th = _largest_divisor_leq(h, row_tile_cap)
    n_h = h // th

    # ---- glue (one fused XLA pass): bf16 cast, channel pad, spatial halo, ----
    # ---- overlapping (th+2)-row windows for plain non-overlapping blocks ----
    xb = _pad_last(x_nhwc.astype(jnp.bfloat16), cinp)
    xp = jnp.pad(xb, ((0, 0), (1, 1), (1, 1), (0, 0)))
    wins = jnp.stack([xp[:, i * th:i * th + th + 2] for i in range(n_h)], axis=1)
    wins = wins.reshape(n * n_h, th + 2, w + 2, cinp)            # 4-D blocks

    # weights / affine params, lane-padded
    w9 = jnp.transpose(w_oihw, (2, 3, 1, 0)).reshape(9, cin_logical, cout)
    w9 = jnp.pad(w9, ((0, 0), (0, cinp - cin_logical),
                      (0, coutp - cout))).astype(jnp.bfloat16)
    b2 = _pad_last(bias[None, :], coutp).astype(jnp.float32)
    gb = jnp.stack([jnp.pad(gamma, (0, coutp - cout)),
                    jnp.pad(beta, (0, coutp - cout))], axis=0).astype(jnp.float32)

    # ---- phase A: tiled conv + batch-stat accumulation ("arbitrary" grid) ----
    conv_out, stats = pl.pallas_call(
        _conv3x3_stats_kernel,
        out_shape=(jax.ShapeDtypeStruct((n, h, w, coutp), jnp.float32),
                   jax.ShapeDtypeStruct((2, coutp), jnp.float32)),
        grid=(n, n_h),
        in_specs=[pl.BlockSpec((1, th + 2, w + 2, cinp),
                               lambda b, i: (b * n_h + i, 0, 0, 0)),
                  pl.BlockSpec((9, cinp, coutp), lambda b, i: (0, 0, 0)),
                  pl.BlockSpec((1, coutp), lambda b, i: (0, 0))],
        out_specs=(pl.BlockSpec((1, th, w, coutp), lambda b, i: (b, i, 0, 0)),
                   pl.BlockSpec((2, coutp), lambda b, i: (0, 0))),
        compiler_params=pltpu.CompilerParams(
            dimension_semantics=("arbitrary", "arbitrary"),
            vmem_limit_bytes=_VMEM_LIMIT),
    )(wins, w9, b2)

    # ---- phase B: tiled normalize + ReLU ("parallel" grid) -------------------
    kernel = functools.partial(_bn_relu_kernel,
                               inv_count=1.0 / float(n * h * w), eps=_BN_EPS)
    out = pl.pallas_call(
        kernel,
        out_shape=jax.ShapeDtypeStruct((n, h, w, coutp), out_dtype),
        grid=(n, n_h),
        in_specs=[pl.BlockSpec((1, th, w, coutp), lambda b, i: (b, i, 0, 0)),
                  pl.BlockSpec((2, coutp), lambda b, i: (0, 0)),
                  pl.BlockSpec((2, coutp), lambda b, i: (0, 0))],
        out_specs=pl.BlockSpec((1, th, w, coutp), lambda b, i: (b, i, 0, 0)),
        compiler_params=pltpu.CompilerParams(
            dimension_semantics=("parallel", "parallel"),
            vmem_limit_bytes=_VMEM_LIMIT),
    )(conv_out, stats, gb)
    return out


# ------------------------------- UpBlock forward ---------------------------- #

def init_params(key, ch_in, ch_out):
    ks = jax.random.split(key, 6)
    return {
        # nn.ConvTranspose2d(ch_in, ch_in, kernel_size=2, stride=2)
        # PyTorch weight layout: (in_channels, out_channels, kH, kW)
        "up_w": 0.1 * jax.random.normal(ks[0], (ch_in, ch_in, 2, 2), jnp.float32),
        "up_b": 0.1 * jax.random.normal(ks[1], (ch_in,), jnp.float32),
        # Conv2d(2*ch_in, ch_out, 3, pad=1): (Cout, Cin, 3, 3)
        "c1_w": 0.1 * jax.random.normal(ks[2], (ch_out, 2 * ch_in, 3, 3), jnp.float32),
        "c1_b": 0.1 * jax.random.normal(ks[3], (ch_out,), jnp.float32),
        "bn1_g": jnp.ones((ch_out,), jnp.float32),
        "bn1_b": jnp.zeros((ch_out,), jnp.float32),
        # Conv2d(ch_out, ch_out, 3, pad=1)
        "c2_w": 0.1 * jax.random.normal(ks[4], (ch_out, ch_out, 3, 3), jnp.float32),
        "c2_b": 0.1 * jax.random.normal(ks[5], (ch_out,), jnp.float32),
        "bn2_g": jnp.ones((ch_out,), jnp.float32),
        "bn2_b": jnp.zeros((ch_out,), jnp.float32),
    }


def upblock_forward(x_nchw, skip_nchw, p):
    n, cin, h, w = x_nchw.shape
    cout = p["c2_w"].shape[0]
    x = jnp.transpose(x_nchw, (0, 2, 3, 1))        # NCHW -> NHWC
    skip = jnp.transpose(skip_nchw, (0, 2, 3, 1))

    # --- ConvTranspose2d(k=2, s=2): one lane-dense tiled matmul + shuffle ----
    cinp = _round_up(cin, _LANES)
    ncols = _round_up(4 * cin, _LANES)
    xf = _pad_last(x.astype(jnp.bfloat16), cinp).reshape(n * h * w, cinp)
    w_mat = jnp.transpose(p["up_w"], (0, 2, 3, 1)).reshape(cin, 4 * cin)
    w_mat = jnp.pad(w_mat, ((0, cinp - cin),
                            (0, ncols - 4 * cin))).astype(jnp.bfloat16)
    b_mat = jnp.pad(jnp.tile(p["up_b"], 4),
                    (0, ncols - 4 * cin))[None, :].astype(jnp.float32)
    yf = _pallas_matmul_bias(xf, w_mat, b_mat)               # (n*h*w, ncols) f32
    y = (yf[:, :4 * cin].reshape(n, h, w, 2, 2, cin)
           .transpose(0, 1, 3, 2, 4, 5).reshape(n, 2 * h, 2 * w, cin))

    # --- torch.cat([x, skip], dim=1) -> channel (last) axis in NHWC ----------
    z = jnp.concatenate([y, skip], axis=-1)                  # (n, 2h, 2w, 2cin)

    # --- ConvBlock: conv+stats / normalize+ReLU, chained on padded channels ---
    z = _pallas_conv3x3_bn_relu(z, p["c1_w"], p["c1_b"], p["bn1_g"], p["bn1_b"],
                                out_dtype=jnp.bfloat16)      # intermediate in bf16
    z = _pallas_conv3x3_bn_relu(z, p["c2_w"], p["c2_b"], p["bn2_g"], p["bn2_b"],
                                out_dtype=jnp.float32)

    return jnp.transpose(z[..., :cout], (0, 3, 1, 2))        # NHWC -> NCHW


# ----------------------------- pure-JAX reference --------------------------- #
# Mirrors the kernel's numerics: bf16 conv/matmul inputs, f32 accumulation,
# training-mode BN (biased variance, eps=1e-5) in f32, bf16 intermediate.

def _ref_conv_bn_relu(x_nhwc, w_oihw, bias, gamma, beta):
    xb = x_nhwc.astype(jnp.bfloat16)
    wb = jnp.transpose(w_oihw, (2, 3, 1, 0)).astype(jnp.bfloat16)   # HWIO
    y = lax.conv_general_dilated(
        xb, wb, window_strides=(1, 1), padding="SAME",
        dimension_numbers=("NHWC", "HWIO", "NHWC"),
        preferred_element_type=jnp.float32) + bias
    mean = jnp.mean(y, axis=(0, 1, 2), keepdims=True)
    var = jnp.mean((y - mean) ** 2, axis=(0, 1, 2), keepdims=True)
    return jnp.maximum((y - mean) * lax.rsqrt(var + _BN_EPS) * gamma + beta, 0.0)


def ref_forward(x_nchw, skip_nchw, p):
    n, cin, h, w = x_nchw.shape
    x = jnp.transpose(x_nchw, (0, 2, 3, 1))
    skip = jnp.transpose(skip_nchw, (0, 2, 3, 1))
    y = jnp.einsum("nhwi,iokl->nhkwlo",
                   x.astype(jnp.bfloat16), p["up_w"].astype(jnp.bfloat16),
                   preferred_element_type=jnp.float32)
    y = y.reshape(n, 2 * h, 2 * w, cin) + p["up_b"]
    z = jnp.concatenate([y, skip], axis=-1)
    z = _ref_conv_bn_relu(z, p["c1_w"], p["c1_b"], p["bn1_g"], p["bn1_b"])
    z = z.astype(jnp.bfloat16).astype(jnp.float32)   # mirror bf16 intermediate
    z = _ref_conv_bn_relu(z, p["c2_w"], p["c2_b"], p["bn2_g"], p["bn2_b"])
    return jnp.transpose(z, (0, 3, 1, 2))


# ----------------------------------- main ----------------------------------- #

if __name__ == "__main__":
    key = jax.random.PRNGKey(0)
    k_x, k_s, k_p = jax.random.split(key, 3)

    N, CH_IN, CH_OUT, H, W = 2, 4, 8, 8, 8
    x = jax.random.normal(k_x, (N, CH_IN, H, W), jnp.float32)             # NCHW
    skip = jax.random.normal(k_s, (N, CH_IN, 2 * H, 2 * W), jnp.float32)  # NCHW
    params = init_params(k_p, CH_IN, CH_OUT)

    out = jax.block_until_ready(upblock_forward(x, skip, params))
    assert out.shape == (N, CH_OUT, 2 * H, 2 * W), out.shape

    ref = jax.block_until_ready(ref_forward(x, skip, params))
    max_err = float(jnp.max(jnp.abs(out - ref)))
    assert jnp.allclose(out, ref, rtol=1e-2, atol=1e-2), max_err

    print("KERNEL_OK")
</pallas_src>

<mosaic_0001>
module attributes {stable_mosaic.version = 11 : i64} {
  func.func @_mm_bias_kernel(%arg0: i32, %arg1: memref<128x128xbf16, #tpu.memory_space<vmem>>, %arg2: memref<128x128xbf16, #tpu.memory_space<vmem>>, %arg3: memref<1x128xf32, #tpu.memory_space<vmem>>, %arg4: memref<128x128xf32, #tpu.memory_space<vmem>>) attributes {dimension_semantics = [#tpu.dimension_semantics<parallel>], iteration_bounds = array<i64: 1>, scalar_prefetch = 0 : i64, scratch_operands = 0 : i64, tpu.core_type = #tpu.core_type<tc>, window_params = [{transform_indices = @transform_0, window_bounds = array<i64: 128, 128>}, {pipeline_mode = #tpu.pipeline_mode<synchronous>, transform_indices = @transform_1, window_bounds = array<i64: 128, 128>}, {pipeline_mode = #tpu.pipeline_mode<synchronous>, transform_indices = @transform_2, window_bounds = array<i64: 1, 128>}, {transform_indices = @transform_3, window_bounds = array<i64: 128, 128>}]} {
    %c0 = arith.constant 0 : index
    %c0_0 = arith.constant 0 : index
    %0 = vector.load %arg1[%c0, %c0_0] : memref<128x128xbf16, #tpu.memory_space<vmem>>, vector<128x128xbf16>
    %c0_1 = arith.constant 0 : index
    %c0_2 = arith.constant 0 : index
    %1 = vector.load %arg2[%c0_1, %c0_2] : memref<128x128xbf16, #tpu.memory_space<vmem>>, vector<128x128xbf16>
    %cst = arith.constant dense<0.000000e+00> : vector<128x128xf32>
    %2 = tpu.matmul %0, %1, %cst {dimension_numbers = #tpu.dot_dimension_numbers<[1], [0], [0], [1], [0, 0, 1, 1], [], []>} : vector<128x128xbf16>, vector<128x128xbf16>, vector<128x128xf32> -> vector<128x128xf32>
    %c0_3 = arith.constant 0 : index
    %c0_4 = arith.constant 0 : index
    %3 = vector.load %arg3[%c0_3, %c0_4] : memref<1x128xf32, #tpu.memory_space<vmem>>, vector<1x128xf32>
    %4 = vector.broadcast %3 : vector<1x128xf32> to vector<128x128xf32>
    %5 = arith.addf %2, %4 : vector<128x128xf32>
    %c0_5 = arith.constant 0 : index
    %c0_6 = arith.constant 0 : index
    %6 = vector.load %arg4[%c0_5, %c0_6] : memref<128x128xf32, #tpu.memory_space<vmem>>, vector<128x128xf32>
    tpu.vector_store %arg4[%c0_5, %c0_6], %5 {strides = array<i32>} : memref<128x128xf32, #tpu.memory_space<vmem>>, vector<128x128xf32>,
    return
  }
  func.func @transform_0(%arg0: i32) -> (i32, i32) {
    %c0_i32 = arith.constant 0 : i32
    %c0_i32_0 = arith.constant 0 : i32
    return %arg0, %c0_i32 : i32, i32
  }
  func.func @transform_1(%arg0: i32) -> (i32, i32) {
    %c0_i32 = arith.constant 0 : i32
    %c0_i32_0 = arith.constant 0 : i32
    %c0_i32_1 = arith.constant 0 : i32
    return %c0_i32, %c0_i32_0 : i32, i32
  }
  func.func @transform_2(%arg0: i32) -> (i32, i32) {
    %c0_i32 = arith.constant 0 : i32
    %c0_i32_0 = arith.constant 0 : i32
    %c0_i32_1 = arith.constant 0 : i32
    return %c0_i32, %c0_i32_0 : i32, i32
  }
  func.func @transform_3(%arg0: i32) -> (i32, i32) {
    %c0_i32 = arith.constant 0 : i32
    %c0_i32_0 = arith.constant 0 : i32
    return %arg0, %c0_i32 : i32, i32
  }
}

</mosaic_0001>

<llo_original>
// kernel: tpu_custom_call.1
$region0: #{tpu_custom_call.1}
  #allocation0 [shape = 'u32[]', space=smem, size = 0x4, offset = 0x4, fixed_abs, tag = 'smem constant byte address 0x4 - core index']
  #allocation1 [shape = 'u32[144,128]{1,0:T(1,128)}', space=vmem, size = 0x12000, scoped, tag = 'internal scratch']
  %s0 = inlined_call_operand.hbm [shape: bf16[128,128], index: 0, kind: input, shape index: {}]
  %s1 = inlined_call_operand.hbm [shape: bf16[128,128], index: 1, kind: input, shape index: {}]
  %s2 = inlined_call_operand.vmem [shape: f32[1,128], index: 2, kind: input, shape index: {}]
  %s3 = inlined_call_operand.hbm [shape: f32[128,128], index: 3, kind: output, shape index: {}]
  %s4 = sld [smem:[#allocation0]]
  $region30: #{tpu_custom_call.1} parent=0
    _
  %s6 = ssub.s32 1, %s4
  %s7 = scalar_select 0, %s6, %s4
  $region1: #{tpu_custom_call.1} parent=0
    #allocation2 [shape = 'u8[32768]{0}', space=vmem, size = 0x8000, scoped, tag = 'input window, operand 0, single buffered']
    #allocation3 [shape = 's32[1]{0}', space=sflag, size = 0x4, scoped, tag = 'scoped memory for tpu_custom_call.1']
    #allocation4 [shape = 's32[1]{0}', space=sflag, size = 0x4, scoped, tag = 'scoped memory for tpu_custom_call.1']
    #allocation5 [shape = 'u8[32768]{0}', space=vmem, size = 0x8000, scoped, tag = 'input window, operand 1, single buffered']
    #allocation6 [shape = 's32[1]{0}', space=sflag, size = 0x4, scoped, tag = 'scoped memory for tpu_custom_call.1']
    #allocation7 [shape = 'u8[65536]{0}', space=vmem, size = 0x10000, scoped, tag = 'output window, operand 0, single buffered']
    %8 = vsyncpa [#allocation3], 0
    %9 = vsyncpa [#allocation6], 0
    %10 = vsyncpa [#allocation4], 0
    // Predicated region
    $region2: #{tpu_custom_call.1} parent=1 // pred_check
      _
    $region3: #{tpu_custom_call.1} parent=1 // pred_check_branch
      %12 = sbr.rel (0) target = $region5
    $region4: #{tpu_custom_call.1} parent=1 // pred_region
      %s14 = ssub.s32 1024, 1024
      %15 = vsyncadd [#allocation3], %s14
      %s16 = sshll.u32 [#allocation2], 4
      %s17 = int_to_ptr.vmem [resolvable:$true] %s16
      %22 = dma.hbm_to_vmem [thread:$0]  %s0, 1024, %s17, [#allocation3], 64, 64, 4
    $region5: #{tpu_custom_call.1} parent=1 // pred_fallthru
      _
    // Predicated region
    $region6: #{tpu_custom_call.1} parent=1 // pred_check
      _
    $region7: #{tpu_custom_call.1} parent=1 // pred_check_branch
      %24 = sbr.rel (0) target = $region9
    $region8: #{tpu_custom_call.1} parent=1 // pred_region
      %s26 = ssub.s32 1024, 1024
      %27 = vsyncadd [#allocation6], %s26
      %s28 = sshll.u32 [#allocation5], 4
      %s29 = int_to_ptr.vmem [resolvable:$true] %s28
      %34 = dma.hbm_to_vmem [thread:$0]  %s1, 1024, %s29, [#allocation6], 64, 64, 4
    $region9: #{tpu_custom_call.1} parent=1 // pred_fallthru
      _
    // Predicated region
    $region10: #{tpu_custom_call.1} parent=1 // pred_check
      _
    $region11: #{tpu_custom_call.1} parent=1 // pred_check_branch
      %36 = sbr.rel (0) target = $region13
    $region12: #{tpu_custom_call.1} parent=1 // pred_region
      _
    $region13: #{tpu_custom_call.1} parent=1 // pred_fallthru
      _
    // Predicated region
    $region14: #{tpu_custom_call.1} parent=1 // pred_check
      _
    $region15: #{tpu_custom_call.1} parent=1 // pred_check_branch
      %38 = sbr.rel (0) target = $region17
    $region16: #{tpu_custom_call.1} parent=1 // pred_region
      %39 = dma.done [#allocation3], 1024
    $region17: #{tpu_custom_call.1} parent=1 // pred_fallthru
      _
    // Predicated region
    $region18: #{tpu_custom_call.1} parent=1 // pred_check
      _
    $region19: #{tpu_custom_call.1} parent=1 // pred_check_branch
      %41 = sbr.rel (0) target = $region21
    $region20: #{tpu_custom_call.1} parent=1 // pred_region
      %42 = dma.done [#allocation6], 1024
    $region21: #{tpu_custom_call.1} parent=1 // pred_fallthru
      _
    %v44 = vld [vmem:[#allocation2] sm:$0xf]
    %v45 = vld [vmem:[#allocation2 + $0x4] sm:$0xf]
    %v46 = vld [vmem:[#allocation2 + $0x8] sm:$0xf]
    %v47 = vld [vmem:[#allocation2 + $0xc] sm:$0xf]
    %v48 = vld [vmem:[#allocation2 + $0x10] sm:$0xf]
    %v49 = vld [vmem:[#allocation2 + $0x14] sm:$0xf]
    %v50 = vld [vmem:[#allocation2 + $0x18] sm:$0xf]
    %v51 = vld [vmem:[#allocation2 + $0x1c] sm:$0xf]
    %v52 = vld [vmem:[#allocation2 + $0x20] sm:$0xf]
    %v53 = vld [vmem:[#allocation2 + $0x24] sm:$0xf]
    %v54 = vld [vmem:[#allocation2 + $0x28] sm:$0xf]
    %v55 = vld [vmem:[#allocation2 + $0x2c] sm:$0xf]
    %v56 = vld [vmem:[#allocation2 + $0x30] sm:$0xf]
    %v57 = vld [vmem:[#allocation2 + $0x34] sm:$0xf]
    %v58 = vld [vmem:[#allocation2 + $0x38] sm:$0xf]
    %v59 = vld [vmem:[#allocation2 + $0x3c] sm:$0xf]
    %v60 = vld [vmem:[#allocation5] sm:$0xf]
    %v61 = vld [vmem:[#allocation5 + $0x4] sm:$0xf]
    %v62 = vld [vmem:[#allocation5 + $0x8] sm:$0xf]
    %v63 = vld [vmem:[#allocation5 + $0xc] sm:$0xf]
    %v64 = vld [vmem:[#allocation5 + $0x10] sm:$0xf]
    %v65 = vld [vmem:[#allocation5 + $0x14] sm:$0xf]
    %v66 = vld [vmem:[#allocation5 + $0x18] sm:$0xf]
    %v67 = vld [vmem:[#allocation5 + $0x1c] sm:$0xf]
    %v68 = vld [vmem:[#allocation5 + $0x20] sm:$0xf]
    %v69 = vld [vmem:[#allocation5 + $0x24] sm:$0xf]
    %v70 = vld [vmem:[#allocation5 + $0x28] sm:$0xf]
    %v71 = vld [vmem:[#allocation5 + $0x2c] sm:$0xf]
    %v72 = vld [vmem:[#allocation5 + $0x30] sm:$0xf]
    %v73 = vld [vmem:[#allocation5 + $0x34] sm:$0xf]
    %v74 = vld [vmem:[#allocation5 + $0x38] sm:$0xf]
    %v75 = vld [vmem:[#allocation5 + $0x3c] sm:$0xf]
    %v76 = vld [vmem:[%s2] sm:$0x1]
    %v78 = vlaneseq
    %v79 = vshrl.u32 %v78, 7
    %v80 = vsub.s32 0, %v79
    %v81 = vrot.slane %v76, %v80
    %v99 = vunpack.c.l.b16 %v44
    %v100 = vunpack.c.l.b16 %v45
    %v101 = vunpack.c.l.b16 %v46
    %v102 = vunpack.c.l.b16 %v47
    %v103 = vunpack.c.l.b16 %v48
    %v104 = vunpack.c.l.b16 %v49
    %v105 = vunpack.c.l.b16 %v50
    %v106 = vunpack.c.l.b16 %v51
    %v107 = vunpack.c.l.b16 %v52
    %v108 = vunpack.c.l.b16 %v53
    %v109 = vunpack.c.l.b16 %v54
    %v110 = vunpack.c.l.b16 %v55
    %v111 = vunpack.c.l.b16 %v56
    %v112 = vunpack.c.l.b16 %v57
    %v113 = vunpack.c.l.b16 %v58
    %v114 = vunpack.c.l.b16 %v59
    %v115 = vpack.c.b16 %v100, %v99
    %v116 = vpack.c.b16 %v102, %v101
    %v117 = vpack.c.b16 %v104, %v103
    %v118 = vpack.c.b16 %v106, %v105
    %v119 = vpack.c.b16 %v108, %v107
    %v120 = vpack.c.b16 %v110, %v109
    %v121 = vpack.c.b16 %v112, %v111
    %v122 = vpack.c.b16 %v114, %v113
    %v147 = vunpack.c.l.b16 %v60
    %v148 = vunpack.c.l.b16 %v61
    %v149 = vunpack.c.l.b16 %v62
    %v150 = vunpack.c.l.b16 %v63
    %v151 = vunpack.c.l.b16 %v64
    %v152 = vunpack.c.l.b16 %v65
    %v153 = vunpack.c.l.b16 %v66
    %v154 = vunpack.c.l.b16 %v67
    %v155 = vunpack.c.l.b16 %v68
    %v156 = vunpack.c.l.b16 %v69
    %v157 = vunpack.c.l.b16 %v70
    %v158 = vunpack.c.l.b16 %v71
    %v159 = vunpack.c.l.b16 %v72
    %v160 = vunpack.c.l.b16 %v73
    %v161 = vunpack.c.l.b16 %v74
    %v162 = vunpack.c.l.b16 %v75
    %v163 = vpack.c.b16 %v148, %v147
    %v164 = vpack.c.b16 %v150, %v149
    %v165 = vpack.c.b16 %v152, %v151
    %v166 = vpack.c.b16 %v154, %v153
    %v167 = vpack.c.b16 %v156, %v155
    %v168 = vpack.c.b16 %v158, %v157
    %v169 = vpack.c.b16 %v160, %v159
    %v170 = vpack.c.b16 %v162, %v161
    %179 = vmatprep.subr.bf16.mxu0 0
    %180 = vmatpush1.bf16.msra.mxu0 %v163
    %181 = vmatprep.subr.bf16.mxu0 0
    %182 = vmatpush1.bf16.msra.mxu0 %v164
    %183 = vmatprep.subr.bf16.mxu0 0
    %184 = vmatpush1.bf16.msra.mxu0 %v165
    %185 = vmatprep.subr.bf16.mxu0 0
    %186 = vmatpush1.bf16.msra.mxu0 %v166
    %187 = vmatprep.subr.bf16.mxu0 0
    %188 = vmatpush1.bf16.msra.mxu0 %v167
    %189 = vmatprep.subr.bf16.mxu0 0
    %190 = vmatpush1.bf16.msra.mxu0 %v168
    %191 = vmatprep.subr.bf16.mxu0 0
    %192 = vmatpush1.bf16.msra.mxu0 %v169
    %193 = vmatprep.subr.bf16.mxu0 0
    %194 = vmatpush1.bf16.msra.mxu0 %v170
    %195 = vmatprep.subr.bf16.mxu0 0
    %196 = vmatpush1.bf16.msra.mxu0 0
    %197 = vmatprep.subr.bf16.mxu0 0
    %198 = vmatpush1.bf16.msra.mxu0 0
    %199 = vmatprep.subr.bf16.mxu0 0
    %200 = vmatpush1.bf16.msra.mxu0 0
    %201 = vmatprep.subr.bf16.mxu0 0
    %202 = vmatpush1.bf16.msra.mxu0 0
    %203 = vmatprep.subr.bf16.mxu0 0
    %204 = vmatpush1.bf16.msra.mxu0 0
    %205 = vmatprep.subr.bf16.mxu0 0
    %206 = vmatpush1.bf16.msra.mxu0 0
    %207 = vmatprep.subr.bf16.mxu0 0
    %208 = vmatpush1.bf16.msra.mxu0 0
    %209 = vmatprep.subr.bf16.mxu0 0
    %210 = vmatpush1.bf16.msra.mxu0 0
    %211 = vmatprep.mubr.bf16.mxu0 0
    %212 = vmatmul.mubr.bf16.gmra.mrb[0].mxu0 %v115
    %v213 = vpop.f32.mrb[0].mxu0
    %v214 = vadd.f32 %v81, %v213
    %v215 = vpop.f32.mrb[0].mxu0
    %v216 = vpop.f32.mrb[0].mxu0
    %v217 = vadd.f32 %v81, %v216
    %v218 = vpop.f32.mrb[0].mxu0
    %219 = vmatprep.mubr.bf16.mxu0 0
    %220 = vmatmul.mubr.bf16.gmra.mrb[0].mxu0 %v116
    %v221 = vpop.f32.mrb[0].mxu0
    %v222 = vadd.f32 %v81, %v221
    %v223 = vpop.f32.mrb[0].mxu0
    %v224 = vpop.f32.mrb[0].mxu0
    %v225 = vadd.f32 %v81, %v224
    %v226 = vpop.f32.mrb[0].mxu0
    %227 = vmatprep.mubr.bf16.mxu0 0
    %228 = vmatmul.mubr.bf16.gmra.mrb[0].mxu0 %v117
    %v229 = vpop.f32.mrb[0].mxu0
    %v230 = vadd.f32 %v81, %v229
    %v231 = vpop.f32.mrb[0].mxu0
    %v232 = vpop.f32.mrb[0].mxu0
    %v233 = vadd.f32 %v81, %v232
    %v234 = vpop.f32.mrb[0].mxu0
    %235 = vmatprep.mubr.bf16.mxu0 0
    %236 = vmatmul.mubr.bf16.gmra.mrb[0].mxu0 %v118
    %v237 = vpop.f32.mrb[0].mxu0
    %v238 = vadd.f32 %v81, %v237
    %v239 = vpop.f32.mrb[0].mxu0
    %v240 = vpop.f32.mrb[0].mxu0
    %v241 = vadd.f32 %v81, %v240
    %v242 = vpop.f32.mrb[0].mxu0
    %243 = vmatprep.mubr.bf16.mxu0 0
    %244 = vmatmul.mubr.bf16.gmra.mrb[0].mxu0 %v119
    %v245 = vpop.f32.mrb[0].mxu0
    %v246 = vadd.f32 %v81, %v245
    %v247 = vpop.f32.mrb[0].mxu0
    %v248 = vpop.f32.mrb[0].mxu0
    %v249 = vadd.f32 %v81, %v248
    %v250 = vpop.f32.mrb[0].mxu0
    %251 = vmatprep.mubr.bf16.mxu0 0
    %252 = vmatmul.mubr.bf16.gmra.mrb[0].mxu0 %v120
    %v253 = vpop.f32.mrb[0].mxu0
    %v254 = vadd.f32 %v81, %v253
    %v255 = vpop.f32.mrb[0].mxu0
    %v256 = vpop.f32.mrb[0].mxu0
    %v257 = vadd.f32 %v81, %v256
    %v258 = vpop.f32.mrb[0].mxu0
    %259 = vmatprep.mubr.bf16.mxu0 0
    %260 = vmatmul.mubr.bf16.gmra.mrb[0].mxu0 %v121
    %v261 = vpop.f32.mrb[0].mxu0
    %v262 = vadd.f32 %v81, %v261
    %v263 = vpop.f32.mrb[0].mxu0
    %v264 = vpop.f32.mrb[0].mxu0
    %v265 = vadd.f32 %v81, %v264
    %v266 = vpop.f32.mrb[0].mxu0
    %267 = vmatprep.mubr.bf16.mxu0 0
    %268 = vmatmul.mubr.bf16.gmra.mrb[0].mxu0 %v122
    %v269 = vpop.f32.mrb[0].mxu0
    %v270 = vadd.f32 %v81, %v269
    %v271 = vpop.f32.mrb[0].mxu0
    %v272 = vpop.f32.mrb[0].mxu0
    %v273 = vadd.f32 %v81, %v272
    %v274 = vpop.f32.mrb[0].mxu0
    %275 = vdwg.mxu0
    %276 = vst [vmem:[#allocation7] sm:$0xff] %v214
    %277 = vst [vmem:[#allocation7 + $0x8] sm:$0xff] %v217
    %278 = vst [vmem:[#allocation7 + $0x10] sm:$0xff] %v222
    %279 = vst [vmem:[#allocation7 + $0x18] sm:$0xff] %v225
    %280 = vst [vmem:[#allocation7 + $0x20] sm:$0xff] %v230
    %281 = vst [vmem:[#allocation7 + $0x28] sm:$0xff] %v233
    %282 = vst [vmem:[#allocation7 + $0x30] sm:$0xff] %v238
    %283 = vst [vmem:[#allocation7 + $0x38] sm:$0xff] %v241
    %284 = vst [vmem:[#allocation7 + $0x40] sm:$0xff] %v246
    %285 = vst [vmem:[#allocation7 + $0x48] sm:$0xff] %v249
    %286 = vst [vmem:[#allocation7 + $0x50] sm:$0xff] %v254
    %287 = vst [vmem:[#allocation7 + $0x58] sm:$0xff] %v257
    %288 = vst [vmem:[#allocation7 + $0x60] sm:$0xff] %v262
    %289 = vst [vmem:[#allocation7 + $0x68] sm:$0xff] %v265
    %290 = vst [vmem:[#allocation7 + $0x70] sm:$0xff] %v270
    %291 = vst [vmem:[#allocation7 + $0x78] sm:$0xff] %v273
    // Predicated region
    $region22: #{tpu_custom_call.1} parent=1 // pred_check
      _
    $region23: #{tpu_custom_call.1} parent=1 // pred_check_branch
      %293 = sbr.rel (0) target = $region25
    $region24: #{tpu_custom_call.1} parent=1 // pred_region
      %s295 = ssub.s32 2048, 2048
      %296 = vsyncadd [#allocation4], %s295
      %s297 = sshll.u32 [#allocation7], 4
      %s298 = int_to_ptr.vmem [resolvable:$true] %s297
      %303 = dma.vmem_to_hbm [thread:$0]  %s298, 2048, %s3, [#allocation4], 128, 128, 8
    $region25: #{tpu_custom_call.1} parent=1 // pred_fallthru
      _
    // Predicated region
    $region26: #{tpu_custom_call.1} parent=1 // pred_check
      _
    $region27: #{tpu_custom_call.1} parent=1 // pred_check_branch
      %305 = sbr.rel (0) target = $region29
    $region28: #{tpu_custom_call.1} parent=1 // pred_region
      %306 = dma.done [#allocation4], 2048
    $region29: #{tpu_custom_call.1} parent=1 // pred_fallthru
      _
    %307 = vsyncpa [#allocation3], 1
    %308 = vsyncpa [#allocation6], 1
    %309 = vsyncpa [#allocation4], 1

</llo_original>
